<compile_context>
chip_gen: v6e
topology: v6e:2x2x1
jax: 0.10.0
libtpu: 0.0.40
codegen_flags: <defaults>
</compile_context>

<pallas_src>
import functools

import jax
import jax.numpy as jnp
from jax import lax
from jax.experimental import pallas as pl
from jax.experimental.pallas import tpu as pltpu


def _cdiv(a, b):
    return -(-a // b)


def _round_up(a, b):
    return _cdiv(a, b) * b


def _loglike_lane_dense(x, y, input_dim_vec):
    """Per-variable log-likelihood, lane-dense layout.

    x: (D, TB) float32  -- features on sublanes, batch on lanes
    y: (K, TB) float32  -- one row per variable (continuous value or class id)
    returns (K, TB) float32
    """
    tb = x.shape[1]
    out_rows = []
    cum = 0
    for idx, dims in enumerate(input_dim_vec):
        yi = y[idx:idx + 1, :]                                     # (1, TB)
        if dims == 1:
            diff = x[cum:cum + 1, :] - yi
            out_rows.append(-(diff * diff))
        else:
            # Per-slice log-softmax: only (dims, TB)-sized temporaries live at once.
            logits = x[cum:cum + dims, :]                          # (dims, TB)
            m = jnp.max(logits, axis=0, keepdims=True)             # (1, TB)
            shifted = logits - m
            log_den = jnp.log(jnp.sum(jnp.exp(shifted), axis=0, keepdims=True))
            # NOTE: out-of-range class ids pick 0.0 from the one-hot sum (valid-input
            # semantics match PyTorch; invalid inputs do not raise like torch CE).
            tgt = yi.astype(jnp.int32)                             # (1, TB)
            cls = lax.broadcasted_iota(jnp.int32, (dims, tb), 0)   # (dims, TB)
            picked = jnp.sum(jnp.where(cls == tgt, shifted, 0.0),
                             axis=0, keepdims=True)                # (1, TB)
            out_rows.append(picked - log_den)
        cum += dims
    return jnp.concatenate(out_rows, axis=0)                       # (K, TB)


def _kernel_none(x_ref, y_ref, o_ref, *, input_dim_vec):
    """Natural-layout tiles: x_ref (TB, D), y_ref (TB, K), o_ref (TB, K)."""
    x = jnp.transpose(x_ref[...].astype(jnp.float32))              # (D, TB) lane-dense
    y = jnp.transpose(y_ref[...].astype(jnp.float32))              # (K, TB)
    out_kt = _loglike_lane_dense(x, y, input_dim_vec)              # (K, TB)
    o_ref[...] = jnp.transpose(out_kt).astype(o_ref.dtype)         # (TB, K) natural store


def _kernel_reduce(x_ref, y_ref, o_ref, *, input_dim_vec, n_rows, block_rows):
    """Fused sum reduction: o_ref is a resident (1, 1) f32 accumulator block."""
    i = pl.program_id(0)

    @pl.when(i == 0)
    def _init():
        o_ref[...] = jnp.zeros_like(o_ref)

    x = jnp.transpose(x_ref[...].astype(jnp.float32))              # (D, TB)
    y = jnp.transpose(y_ref[...].astype(jnp.float32))              # (K, TB)
    out_kt = _loglike_lane_dense(x, y, input_dim_vec)              # (K, TB)

    # Mask batch columns of the ragged final tile (their input is unspecified and
    # exp() of it can be inf/nan).
    col = i * block_rows + lax.broadcasted_iota(jnp.int32, out_kt.shape, 1)
    out_kt = jnp.where(col < n_rows, out_kt, 0.0)
    tile_sum = jnp.sum(jnp.sum(out_kt, axis=1, keepdims=True), axis=0, keepdims=True)
    o_ref[...] += tile_sum


def _pick_batch_tile(n, d, k, x_itemsize, y_itemsize, out_itemsize,
                     input_dim_vec, batch_tile):
    max_dims = max(input_dim_vec)
    # Per batch-row VMEM bytes: double-buffered I/O tiles *plus* in-kernel f32
    # temporaries (transposed x/y copies, per-slice softmax temps, (K, TB) result
    # assembly and its transposed store tile).
    bytes_per_row = (
        2 * (d * x_itemsize + k * y_itemsize)     # double-buffered input tiles
        + 2 * k * out_itemsize                    # double-buffered output tile
        + 4 * (d + k)                             # f32 transposed x / y
        + 4 * (3 * max_dims + 1)                  # logits / shifted / exp + log_den
        + 4 * (2 * k)                             # (K, TB) result + transposed copy
    )
    vmem_budget = 16 * 1024 * 1024                # conservative across v5e / v6e / v7x
    max_tb = max(8, ((vmem_budget // bytes_per_row) // 128) * 128)

    tb = max(8, (int(batch_tile) // 8) * 8)
    tb = min(tb, max_tb)
    # Keep >= ~8 grid steps at large N so the ("parallel",) batch axis gives both
    # v7x TensorCores several blocks each.
    tb = min(tb, max(512, _round_up(_cdiv(n, 8), 128)))
    # Never exceed the (8-aligned-down) batch size; the final block may be ragged.
    tb = min(tb, max(8, (n // 8) * 8))
    if tb >= 128:
        tb = (tb // 128) * 128                    # lane-dense after the in-kernel transpose
    return max(8, (tb // 8) * 8)


def rms_cat_loglike(x, y, input_dim_vec, reduction='none', batch_tile=8192):
    input_dim_vec = tuple(int(d) for d in input_dim_vec)
    if any(d < 1 for d in input_dim_vec):
        raise ValueError('Error, invalid dimension value')
    N, D = x.shape
    K = y.shape[1]
    assert D == sum(input_dim_vec), "x feature dim must equal sum(input_dim_vec)"
    assert K == len(input_dim_vec), "y must have one column per variable"
    if any(d > 1 for d in input_dim_vec) and x.shape[1] == y.shape[1]:
        raise Exception('Input and target seem to be in flat format. '
                        'Need integer cat targets.')

    out_dtype = x.dtype
    tb = _pick_batch_tile(N, D, K,
                          jnp.dtype(x.dtype).itemsize, jnp.dtype(y.dtype).itemsize,
                          jnp.dtype(out_dtype).itemsize, input_dim_vec, batch_tile)
    num_tiles = _cdiv(N, tb)                      # ragged final block handled by Pallas

    in_specs = [pl.BlockSpec((tb, D), lambda i: (i, 0)),
                pl.BlockSpec((tb, K), lambda i: (i, 0))]
    vmem_limit = 32 * 1024 * 1024

    if reduction == 'none':
        kernel = functools.partial(_kernel_none, input_dim_vec=input_dim_vec)
        return pl.pallas_call(
            kernel,
            out_shape=jax.ShapeDtypeStruct((N, K), out_dtype),
            grid=(num_tiles,),
            in_specs=in_specs,
            out_specs=pl.BlockSpec((tb, K), lambda i: (i, 0)),
            compiler_params=pltpu.CompilerParams(
                dimension_semantics=("parallel",),
                vmem_limit_bytes=vmem_limit),
        )(x, y)
    elif reduction in ('sum', 'average'):
        kernel = functools.partial(_kernel_reduce, input_dim_vec=input_dim_vec,
                                   n_rows=N, block_rows=tb)
        total = pl.pallas_call(
            kernel,
            out_shape=jax.ShapeDtypeStruct((1, 1), jnp.float32),
            grid=(num_tiles,),
            in_specs=in_specs,
            out_specs=pl.BlockSpec((1, 1), lambda i: (0, 0)),
            compiler_params=pltpu.CompilerParams(
                dimension_semantics=("arbitrary",),   # sequential accumulation
                vmem_limit_bytes=vmem_limit),
        )(x, y)[0, 0]
        if reduction == 'sum':
            return total
        return total / (N * K)
    else:
        raise ValueError(f"unknown reduction {reduction}")


def _reference(x, y, input_dim_vec):
    """Pure-JAX reference mirroring the PyTorch forward."""
    cols = []
    cum = 0
    for idx, dims in enumerate(input_dim_vec):
        if dims == 1:
            diff = x[:, cum] - y[:, idx]
            cols.append((-(diff * diff))[:, None])
            cum += 1
        else:
            logits = x[:, cum:cum + dims]
            logsm = jax.nn.log_softmax(logits, axis=1)
            tgt = y[:, idx].astype(jnp.int32)
            cols.append(jnp.take_along_axis(logsm, tgt[:, None], axis=1))
            cum += dims
    return jnp.concatenate(cols, axis=1)


def _make_inputs(key, n, input_dim_vec):
    d, k = sum(input_dim_vec), len(input_dim_vec)
    kx, ky_cont, ky_cat = jax.random.split(key, 3)
    x = jax.random.normal(kx, (n, d), dtype=jnp.float32)
    y = jax.random.normal(ky_cont, (n, k), dtype=jnp.float32)
    cat_keys = jax.random.split(ky_cat, k)
    for idx, dims in enumerate(input_dim_vec):
        if dims > 1:
            cls = jax.random.randint(cat_keys[idx], (n,), 0, dims)
            y = y.at[:, idx].set(cls.astype(jnp.float32))
    return x, y


if __name__ == "__main__":
    input_dim_vec = (1, 3, 1, 4, 5, 1)            # mixed continuous / categorical
    K = len(input_dim_vec)                        # 6
    key = jax.random.PRNGKey(0)
    k1, k2 = jax.random.split(key)

    # Exact-tile case.
    x, y = _make_inputs(k1, 16, input_dim_vec)
    out = jax.block_until_ready(rms_cat_loglike(x, y, input_dim_vec, reduction='none'))
    ref = _reference(x, y, input_dim_vec)
    assert out.shape == (16, K)
    assert jnp.allclose(out, ref, atol=1e-5, rtol=1e-5), "mismatch vs reference (none)"

    s = jax.block_until_ready(rms_cat_loglike(x, y, input_dim_vec, reduction='sum'))
    a = jax.block_until_ready(rms_cat_loglike(x, y, input_dim_vec, reduction='average'))
    assert jnp.allclose(s, ref.sum(), atol=1e-4, rtol=1e-5), "mismatch vs reference (sum)"
    assert jnp.allclose(a, ref.mean(), atol=1e-5, rtol=1e-5), "mismatch vs reference (average)"

    # Ragged-batch case (N not a multiple of the tile): exercises the cdiv grid's
    # partial final block and the fused-reduction tail masking.
    x2, y2 = _make_inputs(k2, 20, input_dim_vec)
    out2 = jax.block_until_ready(rms_cat_loglike(x2, y2, input_dim_vec, reduction='none'))
    ref2 = _reference(x2, y2, input_dim_vec)
    assert out2.shape == (20, K)
    assert jnp.allclose(out2, ref2, atol=1e-5, rtol=1e-5), "mismatch vs reference (ragged)"
    s2 = jax.block_until_ready(rms_cat_loglike(x2, y2, input_dim_vec, reduction='sum'))
    assert jnp.allclose(s2, ref2.sum(), atol=1e-4, rtol=1e-5), "mismatch vs reference (ragged sum)"

    print("KERNEL_OK")
</pallas_src>

<mosaic_0001>
module attributes {stable_mosaic.version = 11 : i64} {
  func.func @_kernel_none(%arg0: i32, %arg1: memref<16x15xf32, #tpu.memory_space<vmem>>, %arg2: memref<16x6xf32, #tpu.memory_space<vmem>>, %arg3: memref<16x6xf32, #tpu.memory_space<vmem>>) attributes {dimension_semantics = [#tpu.dimension_semantics<parallel>], iteration_bounds = array<i64: 1>, scalar_prefetch = 0 : i64, scratch_operands = 0 : i64, tpu.core_type = #tpu.core_type<tc>, window_params = [{transform_indices = @transform_0, window_bounds = array<i64: 16, 15>}, {transform_indices = @transform_1, window_bounds = array<i64: 16, 6>}, {transform_indices = @transform_2, window_bounds = array<i64: 16, 6>}]} {
    %c0 = arith.constant 0 : index
    %c0_0 = arith.constant 0 : index
    %0 = vector.load %arg1[%c0, %c0_0] : memref<16x15xf32, #tpu.memory_space<vmem>>, vector<16x15xf32>
    %1 = tpu.transpose %0, [1, 0] : vector<16x15xf32> -> vector<15x16xf32>
    %c0_1 = arith.constant 0 : index
    %c0_2 = arith.constant 0 : index
    %2 = vector.load %arg2[%c0_1, %c0_2] : memref<16x6xf32, #tpu.memory_space<vmem>>, vector<16x6xf32>
    %3 = tpu.transpose %2, [1, 0] : vector<16x6xf32> -> vector<6x16xf32>
    %4 = vector.extract_strided_slice %3 {offsets = [0, 0], sizes = [1, 16], strides = [1, 1]} : vector<6x16xf32> to vector<1x16xf32>
    %5 = vector.extract_strided_slice %1 {offsets = [0, 0], sizes = [1, 16], strides = [1, 1]} : vector<15x16xf32> to vector<1x16xf32>
    %6 = arith.subf %5, %4 : vector<1x16xf32>
    %7 = arith.mulf %6, %6 : vector<1x16xf32>
    %cst = arith.constant 0.000000e+00 : f32
    %8 = vector.broadcast %cst : f32 to vector<1x16xf32>
    %9 = arith.subf %8, %7 : vector<1x16xf32>
    %10 = vector.extract_strided_slice %3 {offsets = [1, 0], sizes = [1, 16], strides = [1, 1]} : vector<6x16xf32> to vector<1x16xf32>
    %11 = vector.extract_strided_slice %1 {offsets = [1, 0], sizes = [3, 16], strides = [1, 1]} : vector<15x16xf32> to vector<3x16xf32>
    %cst_3 = arith.constant dense<0xFF800000> : vector<16xf32>
    %12 = vector.multi_reduction <maximumf>, %11, %cst_3 [0] : vector<3x16xf32> to vector<16xf32>
    %13 = vector.shape_cast %12 : vector<16xf32> to vector<1x16xf32>
    %14 = vector.broadcast %13 : vector<1x16xf32> to vector<3x16xf32>
    %15 = arith.subf %11, %14 : vector<3x16xf32>
    %16 = math.exp %15 : vector<3x16xf32>
    %cst_4 = arith.constant dense<0.000000e+00> : vector<16xf32>
    %17 = vector.multi_reduction <add>, %16, %cst_4 [0] : vector<3x16xf32> to vector<16xf32>
    %18 = vector.shape_cast %17 : vector<16xf32> to vector<1x16xf32>
    %19 = math.log %18 : vector<1x16xf32>
    %20 = arith.fptosi %10 : vector<1x16xf32> to vector<1x16xi32>
    %21 = tpu.iota {dimensions = array<i32: 0>} : vector<3x16xi32>
    %22 = vector.broadcast %20 : vector<1x16xi32> to vector<3x16xi32>
    %23 = arith.cmpi eq, %21, %22 : vector<3x16xi32>
    %cst_5 = arith.constant 0.000000e+00 : f32
    %24 = vector.broadcast %cst_5 : f32 to vector<3x16xf32>
    %25 = arith.select %23, %15, %24 : vector<3x16xi1>, vector<3x16xf32>
    %cst_6 = arith.constant dense<0.000000e+00> : vector<16xf32>
    %26 = vector.multi_reduction <add>, %25, %cst_6 [0] : vector<3x16xf32> to vector<16xf32>
    %27 = vector.shape_cast %26 : vector<16xf32> to vector<1x16xf32>
    %28 = arith.subf %27, %19 : vector<1x16xf32>
    %29 = vector.extract_strided_slice %3 {offsets = [2, 0], sizes = [1, 16], strides = [1, 1]} : vector<6x16xf32> to vector<1x16xf32>
    %30 = vector.extract_strided_slice %1 {offsets = [4, 0], sizes = [1, 16], strides = [1, 1]} : vector<15x16xf32> to vector<1x16xf32>
    %31 = arith.subf %30, %29 : vector<1x16xf32>
    %32 = arith.mulf %31, %31 : vector<1x16xf32>
    %cst_7 = arith.constant 0.000000e+00 : f32
    %33 = vector.broadcast %cst_7 : f32 to vector<1x16xf32>
    %34 = arith.subf %33, %32 : vector<1x16xf32>
    %35 = vector.extract_strided_slice %3 {offsets = [3, 0], sizes = [1, 16], strides = [1, 1]} : vector<6x16xf32> to vector<1x16xf32>
    %36 = vector.extract_strided_slice %1 {offsets = [5, 0], sizes = [4, 16], strides = [1, 1]} : vector<15x16xf32> to vector<4x16xf32>
    %cst_8 = arith.constant dense<0xFF800000> : vector<16xf32>
    %37 = vector.multi_reduction <maximumf>, %36, %cst_8 [0] : vector<4x16xf32> to vector<16xf32>
    %38 = vector.shape_cast %37 : vector<16xf32> to vector<1x16xf32>
    %39 = vector.broadcast %38 : vector<1x16xf32> to vector<4x16xf32>
    %40 = arith.subf %36, %39 : vector<4x16xf32>
    %41 = math.exp %40 : vector<4x16xf32>
    %cst_9 = arith.constant dense<0.000000e+00> : vector<16xf32>
    %42 = vector.multi_reduction <add>, %41, %cst_9 [0] : vector<4x16xf32> to vector<16xf32>
    %43 = vector.shape_cast %42 : vector<16xf32> to vector<1x16xf32>
    %44 = math.log %43 : vector<1x16xf32>
    %45 = arith.fptosi %35 : vector<1x16xf32> to vector<1x16xi32>
    %46 = tpu.iota {dimensions = array<i32: 0>} : vector<4x16xi32>
    %47 = vector.broadcast %45 : vector<1x16xi32> to vector<4x16xi32>
    %48 = arith.cmpi eq, %46, %47 : vector<4x16xi32>
    %cst_10 = arith.constant 0.000000e+00 : f32
    %49 = vector.broadcast %cst_10 : f32 to vector<4x16xf32>
    %50 = arith.select %48, %40, %49 : vector<4x16xi1>, vector<4x16xf32>
    %cst_11 = arith.constant dense<0.000000e+00> : vector<16xf32>
    %51 = vector.multi_reduction <add>, %50, %cst_11 [0] : vector<4x16xf32> to vector<16xf32>
    %52 = vector.shape_cast %51 : vector<16xf32> to vector<1x16xf32>
    %53 = arith.subf %52, %44 : vector<1x16xf32>
    %54 = vector.extract_strided_slice %3 {offsets = [4, 0], sizes = [1, 16], strides = [1, 1]} : vector<6x16xf32> to vector<1x16xf32>
    %55 = vector.extract_strided_slice %1 {offsets = [9, 0], sizes = [5, 16], strides = [1, 1]} : vector<15x16xf32> to vector<5x16xf32>
    %cst_12 = arith.constant dense<0xFF800000> : vector<16xf32>
    %56 = vector.multi_reduction <maximumf>, %55, %cst_12 [0] : vector<5x16xf32> to vector<16xf32>
    %57 = vector.shape_cast %56 : vector<16xf32> to vector<1x16xf32>
    %58 = vector.broadcast %57 : vector<1x16xf32> to vector<5x16xf32>
    %59 = arith.subf %55, %58 : vector<5x16xf32>
    %60 = math.exp %59 : vector<5x16xf32>
    %cst_13 = arith.constant dense<0.000000e+00> : vector<16xf32>
    %61 = vector.multi_reduction <add>, %60, %cst_13 [0] : vector<5x16xf32> to vector<16xf32>
    %62 = vector.shape_cast %61 : vector<16xf32> to vector<1x16xf32>
    %63 = math.log %62 : vector<1x16xf32>
    %64 = arith.fptosi %54 : vector<1x16xf32> to vector<1x16xi32>
    %65 = tpu.iota {dimensions = array<i32: 0>} : vector<5x16xi32>
    %66 = vector.broadcast %64 : vector<1x16xi32> to vector<5x16xi32>
    %67 = arith.cmpi eq, %65, %66 : vector<5x16xi32>
    %cst_14 = arith.constant 0.000000e+00 : f32
    %68 = vector.broadcast %cst_14 : f32 to vector<5x16xf32>
    %69 = arith.select %67, %59, %68 : vector<5x16xi1>, vector<5x16xf32>
    %cst_15 = arith.constant dense<0.000000e+00> : vector<16xf32>
    %70 = vector.multi_reduction <add>, %69, %cst_15 [0] : vector<5x16xf32> to vector<16xf32>
    %71 = vector.shape_cast %70 : vector<16xf32> to vector<1x16xf32>
    %72 = arith.subf %71, %63 : vector<1x16xf32>
    %73 = vector.extract_strided_slice %3 {offsets = [5, 0], sizes = [1, 16], strides = [1, 1]} : vector<6x16xf32> to vector<1x16xf32>
    %74 = vector.extract_strided_slice %1 {offsets = [14, 0], sizes = [1, 16], strides = [1, 1]} : vector<15x16xf32> to vector<1x16xf32>
    %75 = arith.subf %74, %73 : vector<1x16xf32>
    %76 = arith.mulf %75, %75 : vector<1x16xf32>
    %cst_16 = arith.constant 0.000000e+00 : f32
    %77 = vector.broadcast %cst_16 : f32 to vector<1x16xf32>
    %78 = arith.subf %77, %76 : vector<1x16xf32>
    %79 = tpu.concatenate %9, %28, %34, %53, %72, %78 in 0 : vector<1x16xf32>, vector<1x16xf32>, vector<1x16xf32>, vector<1x16xf32>, vector<1x16xf32>, vector<1x16xf32> -> vector<6x16xf32>
    %80 = tpu.transpose %79, [1, 0] : vector<6x16xf32> -> vector<16x6xf32>
    %c0_17 = arith.constant 0 : index
    %c0_18 = arith.constant 0 : index
    %81 = vector.load %arg3[%c0_17, %c0_18] : memref<16x6xf32, #tpu.memory_space<vmem>>, vector<16x6xf32>
    tpu.vector_store %arg3[%c0_17, %c0_18], %80 {strides = array<i32>} : memref<16x6xf32, #tpu.memory_space<vmem>>, vector<16x6xf32>,
    return
  }
  func.func @transform_0(%arg0: i32) -> (i32, i32) {
    %c0_i32 = arith.constant 0 : i32
    %c0_i32_0 = arith.constant 0 : i32
    return %arg0, %c0_i32 : i32, i32
  }
  func.func @transform_1(%arg0: i32) -> (i32, i32) {
    %c0_i32 = arith.constant 0 : i32
    %c0_i32_0 = arith.constant 0 : i32
    return %arg0, %c0_i32 : i32, i32
  }
  func.func @transform_2(%arg0: i32) -> (i32, i32) {
    %c0_i32 = arith.constant 0 : i32
    %c0_i32_0 = arith.constant 0 : i32
    return %arg0, %c0_i32 : i32, i32
  }
}

</mosaic_0001>

<llo_original>
// kernel: tpu_custom_call.1
$region0: #{tpu_custom_call.1}
  #allocation0 [shape = 'u32[]', space=smem, size = 0x4, offset = 0x4, fixed_abs, tag = 'smem constant byte address 0x4 - core index']
  #allocation1 [shape = 'u32[144,128]{1,0:T(1,128)}', space=vmem, size = 0x12000, scoped, tag = 'internal scratch']
  %s0 = inlined_call_operand.vmem [shape: f32[16,15], index: 0, kind: input, shape index: {}]
  %s1 = inlined_call_operand.vmem [shape: f32[16,6], index: 1, kind: input, shape index: {}]
  %s2 = inlined_call_operand.vmem [shape: f32[16,6], index: 2, kind: output, shape index: {}]
  %s3 = sld [smem:[#allocation0]]
  $region18: #{tpu_custom_call.1} parent=0
    _
  %s5 = ssub.s32 1, %s3
  %s6 = scalar_select 0, %s5, %s3
  // Predicated region
  $region2: #{tpu_custom_call.1} parent=0 // pred_check
    _
  $region3: #{tpu_custom_call.1} parent=0 // pred_check_branch
    %8 = sbr.rel (0) target = $region5
  $region4: #{tpu_custom_call.1} parent=0 // pred_region
    _
  $region5: #{tpu_custom_call.1} parent=0 // pred_fallthru
    _
  // Predicated region
  $region6: #{tpu_custom_call.1} parent=0 // pred_check
    _
  $region7: #{tpu_custom_call.1} parent=0 // pred_check_branch
    %10 = sbr.rel (0) target = $region9
  $region8: #{tpu_custom_call.1} parent=0 // pred_region
    _
  $region9: #{tpu_custom_call.1} parent=0 // pred_fallthru
    _
  %v11 = vld [vmem:[%s0] sm:$0xff]
  %v12 = vld [vmem:[%s0 + $0x8] sm:$0xff]
  %13 = vxpose.xlu0.b32.start [1/16] %v11, 128
  %14 = vxpose.xlu0.b32.cont [2/16] %v12, 128
  %15 = vxpose.xlu0.b32.cont [3/16] 0.0, 128
  %16 = vxpose.xlu0.b32.cont [4/16] 0.0, 128
  %17 = vxpose.xlu0.b32.cont [5/16] 0.0, 128
  %18 = vxpose.xlu0.b32.cont [6/16] 0.0, 128
  %19 = vxpose.xlu0.b32.cont [7/16] 0.0, 128
  %20 = vxpose.xlu0.b32.cont [8/16] 0.0, 128
  %21 = vxpose.xlu0.b32.cont [9/16] 0.0, 128
  %22 = vxpose.xlu0.b32.cont [10/16] 0.0, 128
  %23 = vxpose.xlu0.b32.cont [11/16] 0.0, 128
  %24 = vxpose.xlu0.b32.cont [12/16] 0.0, 128
  %25 = vxpose.xlu0.b32.cont [13/16] 0.0, 128
  %26 = vxpose.xlu0.b32.cont [14/16] 0.0, 128
  %27 = vxpose.xlu0.b32.cont [15/16] 0.0, 128
  %28 = vxpose.xlu0.b32.end [16/16] 0.0, 128
  %v29 = vpop.trf.xlu0
  %v30 = vpop.trf.xlu0
  %v31 = vpop.trf.xlu0
  %v32 = vpop.trf.xlu0
  %v33 = vpop.trf.xlu0
  %v34 = vpop.trf.xlu0
  %v35 = vpop.trf.xlu0
  %v36 = vpop.trf.xlu0
  %v37 = vpop.trf.xlu0
  %v38 = vpop.trf.xlu0
  %v39 = vpop.trf.xlu0
  %v40 = vpop.trf.xlu0
  %v41 = vpop.trf.xlu0
  %v42 = vpop.trf.xlu0
  %v43 = vpop.trf.xlu0
  %v44 = vpop.trf.xlu0
  %v45 = vld [vmem:[%s1] sm:$0xff]
  %v46 = vld [vmem:[%s1 + $0x8] sm:$0xff]
  %47 = vxpose.xlu0.b32.start [1/16] %v45, 128
  %48 = vxpose.xlu0.b32.cont [2/16] %v46, 128
  %49 = vxpose.xlu0.b32.cont [3/16] 0.0, 128
  %50 = vxpose.xlu0.b32.cont [4/16] 0.0, 128
  %51 = vxpose.xlu0.b32.cont [5/16] 0.0, 128
  %52 = vxpose.xlu0.b32.cont [6/16] 0.0, 128
  %53 = vxpose.xlu0.b32.cont [7/16] 0.0, 128
  %54 = vxpose.xlu0.b32.cont [8/16] 0.0, 128
  %55 = vxpose.xlu0.b32.cont [9/16] 0.0, 128
  %56 = vxpose.xlu0.b32.cont [10/16] 0.0, 128
  %57 = vxpose.xlu0.b32.cont [11/16] 0.0, 128
  %58 = vxpose.xlu0.b32.cont [12/16] 0.0, 128
  %59 = vxpose.xlu0.b32.cont [13/16] 0.0, 128
  %60 = vxpose.xlu0.b32.cont [14/16] 0.0, 128
  %61 = vxpose.xlu0.b32.cont [15/16] 0.0, 128
  %62 = vxpose.xlu0.b32.end [16/16] 0.0, 128
  %v63 = vpop.trf.xlu0
  %v64 = vpop.trf.xlu0
  %v65 = vpop.trf.xlu0
  %v66 = vpop.trf.xlu0
  %v67 = vpop.trf.xlu0
  %v68 = vpop.trf.xlu0
  %v69 = vpop.trf.xlu0
  %v70 = vpop.trf.xlu0
  %v71 = vpop.trf.xlu0
  %v72 = vpop.trf.xlu0
  %v73 = vpop.trf.xlu0
  %v74 = vpop.trf.xlu0
  %v75 = vpop.trf.xlu0
  %v76 = vpop.trf.xlu0
  %v77 = vpop.trf.xlu0
  %v78 = vpop.trf.xlu0
  %v79 = vsub.f32 %v29, %v63
  %v80 = vmul.f32 %v79, %v79
  %v81 = vsub.f32 0.0, %v80
  %vm82 = vcmask 125953
  %v83 = vsel %vm82, %v29, -inf
  %v84 = vrot.slane %v83, 4
  %v85 = vmax.f32 %v83, %v84
  %v86 = vrot.slane %v85, 2
  %v87 = vmax.f32 %v85, %v86
  %v88 = vrot.slane %v87, 1
  %v89 = vmax.f32 %v87, %v88
  %v90 = vsub.f32 %v29, %v89
  %v91 = vmul.f32 %v90, 1.442695
  %v92 = vpow.pop %v91
  %v94 = vrot.slane %v92, 1
  %vm96 = vcmask 124928
  %v97 = vsel %vm96, %v94, 0.0
  %v98 = vrot.slane %v97, 4
  %v99 = vadd.f32 %v97, %v98
  %v100 = vrot.slane %v99, 2
  %v101 = vadd.f32 %v99, %v100
  %v102 = vrot.slane %v101, 1
  %v103 = vadd.f32 %v101, %v102
  %v104 = vlog2.pop %v103
  %v105 = vmul.f32 %v104, 0.6931472
  %v106 = vcvt.f32.s32.to.zero.pseudo %v63
  %v107 = vlaneseq
  %v108 = vshrl.u32 %v107, 7
  %v109 = vlaneseq
  %v110 = vshrl.u32 %v109, 7
  %v111 = vsub.s32 1, %v110
  %v112 = vrot.slane %v106, %v111
  %vm113 = vcmp.eq.s32.totalorder %v108, %v112
  %v115 = vrot.slane %v90, 1
  %v117 = vsel %vm113, %v115, 0.0
  %v118 = vsel %vm96, %v117, 0.0
  %v119 = vrot.slane %v118, 4
  %v120 = vadd.f32 %v118, %v119
  %v121 = vrot.slane %v120, 2
  %v122 = vadd.f32 %v120, %v121
  %v123 = vrot.slane %v122, 1
  %v124 = vadd.f32 %v122, %v123
  %v125 = vsub.f32 %v124, %v105
  %v127 = vrot.slane %v63, 6
  %v129 = vsub.f32 %v29, %v127
  %v130 = vmul.f32 %v129, %v129
  %v131 = vsub.f32 0.0, %v130
  %vm132 = vcmask 130053
  %v133 = vsel %vm132, %v29, -inf
  %vm134 = vcmask 122880
  %v135 = vsel %vm134, %v30, -inf
  %v136 = vmax.f32 %v133, %v135
  %v137 = vrot.slane %v136, 4
  %v138 = vmax.f32 %v136, %v137
  %v139 = vrot.slane %v138, 2
  %v140 = vmax.f32 %v138, %v139
  %v141 = vrot.slane %v140, 1
  %v142 = vmax.f32 %v140, %v141
  %v143 = vsub.f32 %v29, %v142
  %v144 = vsub.f32 %v30, %v142
  %v145 = vmul.f32 %v143, 1.442695
  %v146 = vpow.pop %v145
  %v147 = vmul.f32 %v144, 1.442695
  %v148 = vpow.pop %v147
  %vm151 = vcmask 1042432
  %v152 = vrot.slane %v146, 5
  %v153 = vrot.slane %v148, 5
  %v154 = vsel %vm151, %v152, %v153
  %vm156 = vcmask 125952
  %v157 = vsel %vm156, %v154, 0.0
  %v158 = vrot.slane %v157, 4
  %v159 = vadd.f32 %v157, %v158
  %v160 = vrot.slane %v159, 2
  %v161 = vadd.f32 %v159, %v160
  %v162 = vrot.slane %v161, 1
  %v163 = vadd.f32 %v161, %v162
  %v164 = vlog2.pop %v163
  %v165 = vmul.f32 %v164, 0.6931472
  %v166 = vlaneseq
  %v167 = vshrl.u32 %v166, 7
  %v168 = vsub.s32 3, %v167
  %v169 = vrot.slane %v106, %v168
  %vm170 = vcmp.eq.s32.totalorder %v108, %v169
  %v173 = vrot.slane %v143, 5
  %v174 = vrot.slane %v144, 5
  %v175 = vsel %vm151, %v173, %v174
  %v177 = vsel %vm170, %v175, 0.0
  %v178 = vsel %vm156, %v177, 0.0
  %v179 = vrot.slane %v178, 4
  %v180 = vadd.f32 %v178, %v179
  %v181 = vrot.slane %v180, 2
  %v182 = vadd.f32 %v180, %v181
  %v183 = vrot.slane %v182, 1
  %v184 = vadd.f32 %v182, %v183
  %v185 = vsub.f32 %v184, %v165
  %vm186 = vcmask 128001
  %v187 = vsel %vm186, %v30, -inf
  %v188 = vrot.slane %v187, 4
  %v189 = vmax.f32 %v187, %v188
  %v190 = vrot.slane %v189, 2
  %v191 = vmax.f32 %v189, %v190
  %v192 = vrot.slane %v191, 1
  %v193 = vmax.f32 %v191, %v192
  %v194 = vsub.f32 %v30, %v193
  %v195 = vmul.f32 %v194, 1.442695
  %v196 = vpow.pop %v195
  %v198 = vrot.slane %v196, 1
  %vm200 = vcmask 126976
  %v201 = vsel %vm200, %v198, 0.0
  %v202 = vrot.slane %v201, 4
  %v203 = vadd.f32 %v201, %v202
  %v204 = vrot.slane %v203, 2
  %v205 = vadd.f32 %v203, %v204
  %v206 = vrot.slane %v205, 1
  %v207 = vadd.f32 %v205, %v206
  %v208 = vlog2.pop %v207
  %v209 = vmul.f32 %v208, 0.6931472
  %v210 = vlaneseq
  %v211 = vshrl.u32 %v210, 7
  %v212 = vsub.s32 4, %v211
  %v213 = vrot.slane %v106, %v212
  %vm214 = vcmp.eq.s32.totalorder %v108, %v213
  %v216 = vrot.slane %v194, 1
  %v218 = vsel %vm214, %v216, 0.0
  %v219 = vsel %vm200, %v218, 0.0
  %v220 = vrot.slane %v219, 4
  %v221 = vadd.f32 %v219, %v220
  %v222 = vrot.slane %v221, 2
  %v223 = vadd.f32 %v221, %v222
  %v224 = vrot.slane %v223, 1
  %v225 = vadd.f32 %v223, %v224
  %v226 = vsub.f32 %v225, %v209
  %v227 = vrot.slane %v63, 7
  %v229 = vsub.f32 %v30, %v227
  %v230 = vmul.f32 %v229, %v229
  %v231 = vsub.f32 0.0, %v230
  %v233 = vrot.slane %v131, 2
  %v236 = vrot.slane %v231, 1
  %vm238 = vcmask 1040384
  %v239 = vsel %vm238, %v81, %v125
  %vm240 = vcmask 1041408
  %v241 = vsel %vm240, %v239, %v233
  %v242 = vsel %vm151, %v241, %v185
  %vm243 = vcmask 1043456
  %v244 = vsel %vm243, %v242, %v226
  %vm245 = vcmask 1044480
  %v246 = vsel %vm245, %v244, %v236
  %247 = vxpose.xlu0.b32.start [1/16] %v246, 128
  %248 = vxpose.xlu0.b32.cont [2/16] 0.0, 128
  %249 = vxpose.xlu0.b32.cont [3/16] 0.0, 128
  %250 = vxpose.xlu0.b32.cont [4/16] 0.0, 128
  %251 = vxpose.xlu0.b32.cont [5/16] 0.0, 128
  %252 = vxpose.xlu0.b32.cont [6/16] 0.0, 128
  %253 = vxpose.xlu0.b32.cont [7/16] 0.0, 128
  %254 = vxpose.xlu0.b32.cont [8/16] 0.0, 128
  %255 = vxpose.xlu0.b32.cont [9/16] 0.0, 128
  %256 = vxpose.xlu0.b32.cont [10/16] 0.0, 128
  %257 = vxpose.xlu0.b32.cont [11/16] 0.0, 128
  %258 = vxpose.xlu0.b32.cont [12/16] 0.0, 128
  %259 = vxpose.xlu0.b32.cont [13/16] 0.0, 128
  %260 = vxpose.xlu0.b32.cont [14/16] 0.0, 128
  %261 = vxpose.xlu0.b32.cont [15/16] 0.0, 128
  %262 = vxpose.xlu0.b32.end [16/16] 0.0, 128
  %v263 = vpop.trf.xlu0
  %v264 = vpop.trf.xlu0
  %v265 = vpop.trf.xlu0
  %v266 = vpop.trf.xlu0
  %v267 = vpop.trf.xlu0
  %v268 = vpop.trf.xlu0
  %v269 = vpop.trf.xlu0
  %v270 = vpop.trf.xlu0
  %v271 = vpop.trf.xlu0
  %v272 = vpop.trf.xlu0
  %v273 = vpop.trf.xlu0
  %v274 = vpop.trf.xlu0
  %v275 = vpop.trf.xlu0
  %v276 = vpop.trf.xlu0
  %v277 = vpop.trf.xlu0
  %v278 = vpop.trf.xlu0
  %vm279 = vcmask 48128
  %280 = vst.msk [vmem:[%s2] sm:$0xff] %vm279, %v263
  %281 = vst.msk [vmem:[%s2 + $0x8] sm:$0xff] %vm279, %v264
  // Predicated region
  $region10: #{tpu_custom_call.1} parent=0 // pred_check
    _
  $region11: #{tpu_custom_call.1} parent=0 // pred_check_branch
    %283 = sbr.rel (0) target = $region13
  $region12: #{tpu_custom_call.1} parent=0 // pred_region
    _
  $region13: #{tpu_custom_call.1} parent=0 // pred_fallthru
    _
  // Predicated region
  $region14: #{tpu_custom_call.1} parent=0 // pred_check
    _
  $region15: #{tpu_custom_call.1} parent=0 // pred_check_branch
    %285 = sbr.rel (0) target = $region17
  $region16: #{tpu_custom_call.1} parent=0 // pred_region
    _
  $region17: #{tpu_custom_call.1} parent=0 // pred_fallthru
    _

</llo_original>
